<compile_context>
chip_gen: v5e
topology: v5e:2x2
jax: 0.10.0
libtpu: 0.0.40
codegen_flags: <defaults>
</compile_context>

<pallas_src>
import jax
import jax.numpy as jnp
from jax.experimental import pallas as pl
from jax.experimental.pallas import tpu as pltpu

# config (synthetic)
HIDDEN_DIM = 16
IS_COVERAGE = True
N = HIDDEN_DIM * 2   # feature dim
LANE = 128           # TPU lane width


def _attention_kernel(s_ref, eo_ref, ef_ref, mask_ref, cov_ref,
                      wdec_ref, pvec_ref,
                      ct_ref, attn_ref, covout_ref):
    # Per grid step (one batch tile of bt rows), Tp lane-dense everywhere:
    #   s_ref    (bt, N)         decoder state
    #   eo_ref   (bt, N, Tp)     encoder_outputs (streamed, maybe bf16)
    #   ef_ref   (bt, N, Tp)     encoder_feature (streamed, maybe bf16)
    #   mask_ref (bt, Tp)        f32 padding mask
    #   cov_ref  (bt, Tp)        f32 coverage
    #   wdec_ref (N, N)          decode_proj.weight (out, in)
    #   pvec_ref (N, 3)          packed [bias | v | W_c], N on sublanes
    f32 = jnp.float32
    bias_col = pvec_ref[:, 0:1][None]                               # (1, N, 1)
    v_col = pvec_ref[:, 1:2][None]                                  # (1, N, 1)

    # decode_proj, produced directly in the lane-broadcastable (bt, N, 1) layout:
    #   dec3[b, n, 0] = sum_i wdec[n, i] * s[b, i] + bias[n]
    # (tiny VPU multiply + lane-reduce over N_in; avoids any lanes->sublanes
    #  relayout of a matmul result inside the hot loop.)
    prod = wdec_ref[...][None] * s_ref[...][:, None, :]             # (bt, N, Nin)
    dec3 = jnp.sum(prod, axis=-1, keepdims=True) + bias_col         # (bt, N, 1)

    att = ef_ref[...].astype(f32) + dec3                            # (bt, N, Tp)
    if IS_COVERAGE:
        wc_col = pvec_ref[:, 2:3][None]                             # (1, N, 1)
        # W_c(coverage.view(-1,1)) == coverage[b,t] * w_c[n]
        att = att + cov_ref[...][:, None, :] * wc_col               # (bt, N, Tp)

    e = jnp.tanh(att)                                               # EUP, (bt, N, Tp)

    # scores[b, t] = sum_n v[n] * e[b, n, t]  (sublane reduce over N)
    scores = jnp.sum(e * v_col, axis=1, keepdims=True)[:, 0, :]     # (bt, Tp)

    # Fused masked softmax + renormalization (mathematically exact):
    #   softmax(s)*mask / sum(softmax(s)*mask) == exp(s-m)*mask / sum(exp(s-m)*mask)
    # Masking before the max just improves numerical headroom (result identical).
    mask = mask_ref[...]
    neg = (mask - 1.0) * 1e9
    m = jnp.max(scores + neg, axis=-1, keepdims=True)
    p = jnp.exp(scores + neg - m) * mask                            # (bt, Tp)
    attn = p * pl.reciprocal(jnp.sum(p, axis=-1, keepdims=True),
                             approx=False)                          # (bt, Tp)

    # context vector: flash-style batched contraction over the shared lane (Tp) axis.
    c_t = jnp.einsum('bqt,bnt->bqn', attn[:, None, :],
                     eo_ref[...].astype(f32),
                     preferred_element_type=f32)[:, 0, :]           # (bt, N)

    ct_ref[...] = c_t
    attn_ref[...] = attn
    if IS_COVERAGE:
        covout_ref[...] = cov_ref[...] + attn
    else:
        covout_ref[...] = cov_ref[...]


def attention_forward(s_t_hat, encoder_outputs, encoder_feature,
                      enc_padding_mask, coverage, params,
                      batch_tile=256, stream_dtype=jnp.bfloat16):
    b, t_k, n = encoder_outputs.shape

    wdec, bdec, v_w, wc_w = params
    wdec_f = wdec.astype(jnp.float32)                                # (N, N) (out, in)
    # Pack the three small parameter vectors with N on sublanes: [bias | v | W_c].
    pvec = jnp.stack([bdec.reshape(n), v_w.reshape(n), wc_w.reshape(n)],
                     axis=1).astype(jnp.float32)                     # (N, 3)

    # --- pad T to a lane multiple and flip layout so Tp is the minor (lane) dim.
    t_p = LANE * pl.cdiv(t_k, LANE)
    pad_t = t_p - t_k
    eo = jnp.pad(encoder_outputs.astype(jnp.float32), ((0, 0), (0, pad_t), (0, 0)))
    ef = jnp.pad(encoder_feature.reshape(b, t_k, n).astype(jnp.float32),
                 ((0, 0), (0, pad_t), (0, 0)))
    # (B, N, Tp): layout plumbing done once in the wrapper; streamed in stream_dtype.
    # TODO(synk): if the encoder projection W_h were available, encoder_feature
    # could be recomputed in-kernel on the idle MXU instead of streamed from HBM.
    eo_t = jnp.transpose(eo, (0, 2, 1)).astype(stream_dtype)
    ef_t = jnp.transpose(ef, (0, 2, 1)).astype(stream_dtype)
    mask_p = jnp.pad(enc_padding_mask.astype(jnp.float32), ((0, 0), (0, pad_t)))
    cov_p = jnp.pad(coverage.astype(jnp.float32), ((0, 0), (0, pad_t)))

    # --- VMEM accounting per batch row of a tile (streams, outputs, temporaries).
    sb = jnp.dtype(stream_dtype).itemsize
    row_bytes = (
        2 * 2 * (n * t_p * sb)      # eo_t, ef_t blocks x 2 pipeline buffers
        + 4 * 2 * (t_p * 4)         # mask, cov in + attn, cov_out out x 2 buffers (f32)
        + 4 * (n * t_p * 4)         # in-kernel (N, Tp) f32 temporaries (upcasts, att, tanh, ...)
        + 8 * (t_p * 4)             # (bt, Tp) f32 temporaries (scores, p, ...)
        + (n * n * 4)               # decode_proj outer-product temp
        + (n * 128 * 4)             # dec3 (N, 1) lane-padded
        + 8 * (n * 4)               # small per-row vectors (s, c_t, ...)
    )
    # generation-aware budget: v7x has 64 MiB VMEM per TensorCore, v5e/v6e 128 MiB.
    try:
        vmem_cap = int(pltpu.get_tpu_info().vmem_capacity_bytes)
    except Exception:
        vmem_cap = 64 * 1024 * 1024
    budget = int(vmem_cap * 0.70)

    # --- batch tiling: biggest tile that fits, 8-aligned, >= 2 grid steps when B > 8.
    bt_cap = max(1, budget // row_bytes)
    if b <= 8:
        bt = b
    else:
        bt = min(batch_tile, bt_cap, b)
        bt = max(8, (bt // 8) * 8)
        # keep >= 2 grid steps so the "parallel" batch axis can shard across the
        # two TensorCores on v7x and the BlockSpec pipeline has work to overlap.
        bt = min(bt, 8 * pl.cdiv(pl.cdiv(b, 2), 8))
    # TODO(synk): for very long T_k with tiny B, add a second ("arbitrary") grid
    # axis over Tp chunks with flash-style running max/sum + context accumulator.
    b_p = bt * pl.cdiv(b, bt)
    pad_b = b_p - b

    s_in = s_t_hat.astype(jnp.float32)
    if pad_b:
        s_in = jnp.pad(s_in, ((0, pad_b), (0, 0)))
        eo_t = jnp.pad(eo_t, ((0, pad_b), (0, 0), (0, 0)))
        ef_t = jnp.pad(ef_t, ((0, pad_b), (0, 0), (0, 0)))
        # padded batch rows get mask = 1 so the normalization never divides by 0
        mask_p = jnp.concatenate(
            [mask_p, jnp.ones((pad_b, t_p), jnp.float32)], axis=0)
        cov_p = jnp.pad(cov_p, ((0, pad_b), (0, 0)))

    est_bytes = row_bytes * bt + (n * n + n * 128) * 4
    vmem_limit = int(max(32 * 1024 * 1024,
                         min(vmem_cap - 4 * 1024 * 1024, 2 * est_bytes)))

    out_shapes = (
        jax.ShapeDtypeStruct((b_p, n), jnp.float32),     # c_t
        jax.ShapeDtypeStruct((b_p, t_p), jnp.float32),   # attn_dist
        jax.ShapeDtypeStruct((b_p, t_p), jnp.float32),   # coverage
    )
    const2 = lambda i: (0, 0)

    c_t, attn, cov_out = pl.pallas_call(
        _attention_kernel,
        out_shape=out_shapes,
        grid=(b_p // bt,),
        in_specs=[
            pl.BlockSpec((bt, n), lambda i: (i, 0)),              # s_t_hat
            pl.BlockSpec((bt, n, t_p), lambda i: (i, 0, 0)),      # encoder_outputs (B,N,Tp)
            pl.BlockSpec((bt, n, t_p), lambda i: (i, 0, 0)),      # encoder_feature (B,N,Tp)
            pl.BlockSpec((bt, t_p), lambda i: (i, 0)),            # padding mask
            pl.BlockSpec((bt, t_p), lambda i: (i, 0)),            # coverage
            pl.BlockSpec((n, n), const2),                         # decode_proj.weight
            pl.BlockSpec((n, 3), const2),                         # packed [bias | v | W_c]
        ],
        out_specs=[
            pl.BlockSpec((bt, n), lambda i: (i, 0)),
            pl.BlockSpec((bt, t_p), lambda i: (i, 0)),
            pl.BlockSpec((bt, t_p), lambda i: (i, 0)),
        ],
        compiler_params=pltpu.CompilerParams(
            dimension_semantics=("parallel",),
            vmem_limit_bytes=vmem_limit),
    )(s_in, eo_t, ef_t, mask_p, cov_p, wdec_f, pvec)

    # Slice off batch / T padding (PyTorch returns (B, N), (B, T), (B, T)).
    return c_t[:b], attn[:b, :t_k], cov_out[:b, :t_k]


def attention_reference(s_t_hat, encoder_outputs, encoder_feature,
                        enc_padding_mask, coverage, params):
    """Pure-JAX reference (mirrors the PyTorch forward exactly, all f32)."""
    wdec, bdec, v_w, wc_w = params
    b, t_k, n = encoder_outputs.shape
    dec_fea = s_t_hat @ wdec.T + bdec                       # (B, N)
    dec_exp = jnp.broadcast_to(dec_fea[:, None, :], (b, t_k, n)).reshape(-1, n)
    att = encoder_feature + dec_exp
    if IS_COVERAGE:
        att = att + coverage.reshape(-1, 1) @ wc_w.reshape(1, n)
    e = jnp.tanh(att)
    scores = (e @ v_w.reshape(n, 1)).reshape(b, t_k)
    attn_ = jax.nn.softmax(scores, axis=1) * enc_padding_mask
    attn = attn_ / attn_.sum(1, keepdims=True)
    c_t = jnp.einsum('bt,btn->bn', attn, encoder_outputs)
    cov_out = coverage + attn if IS_COVERAGE else coverage
    return c_t, attn, cov_out


if __name__ == "__main__":
    B, T = 2, 8
    key = jax.random.PRNGKey(0)
    ks = jax.random.split(key, 8)

    # deterministic parameter init (shapes from the nn.Linear definitions)
    wdec = jax.random.normal(ks[0], (N, N), jnp.float32) * 0.1   # decode_proj.weight (out,in)
    bdec = jax.random.normal(ks[1], (N,), jnp.float32) * 0.1     # decode_proj.bias
    v_w = jax.random.normal(ks[2], (1, N), jnp.float32) * 0.1    # v.weight
    wc_w = jax.random.normal(ks[3], (N, 1), jnp.float32) * 0.1   # W_c.weight
    params = (wdec, bdec, v_w, wc_w)

    # inputs
    s_t_hat = jax.random.normal(ks[4], (B, N), jnp.float32)
    encoder_outputs = jax.random.normal(ks[5], (B, T, N), jnp.float32)
    encoder_feature = jax.random.normal(ks[6], (B * T, N), jnp.float32)
    # padding mask: last 2 positions of batch 1 padded
    enc_padding_mask = jnp.ones((B, T), jnp.float32).at[1, -2:].set(0.0)
    coverage = jnp.abs(jax.random.normal(ks[7], (B, T), jnp.float32)) * 0.5

    c_ref, a_ref, cv_ref = attention_reference(
        s_t_hat, encoder_outputs, encoder_feature, enc_padding_mask, coverage, params)

    # exact path: stream the encoder tensors in f32
    c_t, attn, cov_out = attention_forward(
        s_t_hat, encoder_outputs, encoder_feature, enc_padding_mask, coverage,
        params, stream_dtype=jnp.float32)
    jax.block_until_ready((c_t, attn, cov_out))
    assert jnp.allclose(c_t, c_ref, atol=1e-5, rtol=1e-5)
    assert jnp.allclose(attn, a_ref, atol=1e-5, rtol=1e-5)
    assert jnp.allclose(cov_out, cv_ref, atol=1e-5, rtol=1e-5)

    # fast path: bf16 streaming of the two big encoder tensors (HBM-bound lever),
    # compute still f32 in-kernel -> only input-quantization error remains.
    c_t16, attn16, cov16 = attention_forward(
        s_t_hat, encoder_outputs, encoder_feature, enc_padding_mask, coverage,
        params, stream_dtype=jnp.bfloat16)
    jax.block_until_ready((c_t16, attn16, cov16))
    assert jnp.allclose(c_t16, c_ref, atol=3e-2, rtol=3e-2)
    assert jnp.allclose(attn16, a_ref, atol=3e-2, rtol=3e-2)
    assert jnp.allclose(cov16, cv_ref, atol=3e-2, rtol=3e-2)

    print("KERNEL_OK")
</pallas_src>

<mosaic_0001>
module attributes {stable_mosaic.version = 11 : i64} {
  func.func @_attention_kernel(%arg0: i32, %arg1: memref<2x32xf32, #tpu.memory_space<vmem>>, %arg2: memref<2x32x128xf32, #tpu.memory_space<vmem>>, %arg3: memref<2x32x128xf32, #tpu.memory_space<vmem>>, %arg4: memref<2x128xf32, #tpu.memory_space<vmem>>, %arg5: memref<2x128xf32, #tpu.memory_space<vmem>>, %arg6: memref<32x32xf32, #tpu.memory_space<vmem>>, %arg7: memref<32x3xf32, #tpu.memory_space<vmem>>, %arg8: memref<2x32xf32, #tpu.memory_space<vmem>>, %arg9: memref<2x128xf32, #tpu.memory_space<vmem>>, %arg10: memref<2x128xf32, #tpu.memory_space<vmem>>) attributes {dimension_semantics = [#tpu.dimension_semantics<parallel>], iteration_bounds = array<i64: 1>, scalar_prefetch = 0 : i64, scratch_operands = 0 : i64, tpu.core_type = #tpu.core_type<tc>, window_params = [{transform_indices = @transform_0, window_bounds = array<i64: 2, 32>}, {transform_indices = @transform_1, window_bounds = array<i64: 2, 32, 128>}, {transform_indices = @transform_2, window_bounds = array<i64: 2, 32, 128>}, {transform_indices = @transform_3, window_bounds = array<i64: 2, 128>}, {transform_indices = @transform_4, window_bounds = array<i64: 2, 128>}, {pipeline_mode = #tpu.pipeline_mode<synchronous>, transform_indices = @transform_5, window_bounds = array<i64: 32, 32>}, {pipeline_mode = #tpu.pipeline_mode<synchronous>, transform_indices = @transform_6, window_bounds = array<i64: 32, 3>}, {transform_indices = @transform_7, window_bounds = array<i64: 2, 32>}, {transform_indices = @transform_8, window_bounds = array<i64: 2, 128>}, {transform_indices = @transform_9, window_bounds = array<i64: 2, 128>}]} {
    %c0 = arith.constant 0 : index
    %c0_0 = arith.constant 0 : index
    %0 = vector.load %arg7[%c0, %c0_0] : memref<32x3xf32, #tpu.memory_space<vmem>>, vector<32x1xf32>
    %1 = vector.shape_cast %0 : vector<32x1xf32> to vector<1x32x1xf32>
    %c0_1 = arith.constant 0 : index
    %c1 = arith.constant 1 : index
    %2 = vector.load %arg7[%c0_1, %c1] : memref<32x3xf32, #tpu.memory_space<vmem>>, vector<32x1xf32>
    %3 = vector.shape_cast %2 : vector<32x1xf32> to vector<1x32x1xf32>
    %c0_2 = arith.constant 0 : index
    %c0_3 = arith.constant 0 : index
    %4 = vector.load %arg6[%c0_2, %c0_3] : memref<32x32xf32, #tpu.memory_space<vmem>>, vector<32x32xf32>
    %5 = vector.shape_cast %4 : vector<32x32xf32> to vector<1x32x32xf32>
    %c0_4 = arith.constant 0 : index
    %c0_5 = arith.constant 0 : index
    %6 = vector.load %arg1[%c0_4, %c0_5] : memref<2x32xf32, #tpu.memory_space<vmem>>, vector<2x32xf32>
    %7 = vector.shape_cast %6 : vector<2x32xf32> to vector<2x1x32xf32>
    %8 = vector.broadcast %5 : vector<1x32x32xf32> to vector<2x32x32xf32>
    %9 = vector.broadcast %7 : vector<2x1x32xf32> to vector<2x32x32xf32>
    %10 = arith.mulf %8, %9 : vector<2x32x32xf32>
    %cst = arith.constant dense<0.000000e+00> : vector<2x32xf32>
    %11 = vector.multi_reduction <add>, %10, %cst [2] : vector<2x32x32xf32> to vector<2x32xf32>
    %12 = vector.shape_cast %11 : vector<2x32xf32> to vector<2x32x1xf32>
    %13 = vector.broadcast %1 : vector<1x32x1xf32> to vector<2x32x1xf32>
    %14 = arith.addf %12, %13 : vector<2x32x1xf32>
    %c0_6 = arith.constant 0 : index
    %c0_7 = arith.constant 0 : index
    %c0_8 = arith.constant 0 : index
    %15 = vector.load %arg3[%c0_6, %c0_7, %c0_8] : memref<2x32x128xf32, #tpu.memory_space<vmem>>, vector<2x32x128xf32>
    %16 = vector.broadcast %14 : vector<2x32x1xf32> to vector<2x32x128xf32>
    %17 = arith.addf %15, %16 : vector<2x32x128xf32>
    %c0_9 = arith.constant 0 : index
    %c2 = arith.constant 2 : index
    %18 = vector.load %arg7[%c0_9, %c2] : memref<32x3xf32, #tpu.memory_space<vmem>>, vector<32x1xf32>
    %19 = vector.shape_cast %18 : vector<32x1xf32> to vector<1x32x1xf32>
    %c0_10 = arith.constant 0 : index
    %c0_11 = arith.constant 0 : index
    %20 = vector.load %arg5[%c0_10, %c0_11] : memref<2x128xf32, #tpu.memory_space<vmem>>, vector<2x128xf32>
    %21 = vector.shape_cast %20 : vector<2x128xf32> to vector<2x1x128xf32>
    %22 = vector.broadcast %21 : vector<2x1x128xf32> to vector<2x32x128xf32>
    %23 = vector.broadcast %19 : vector<1x32x1xf32> to vector<2x32x128xf32>
    %24 = arith.mulf %22, %23 : vector<2x32x128xf32>
    %25 = arith.addf %17, %24 : vector<2x32x128xf32>
    %26 = math.tanh %25 : vector<2x32x128xf32>
    %27 = vector.broadcast %3 : vector<1x32x1xf32> to vector<2x32x128xf32>
    %28 = arith.mulf %26, %27 : vector<2x32x128xf32>
    %cst_12 = arith.constant dense<0.000000e+00> : vector<2x128xf32>
    %29 = vector.multi_reduction <add>, %28, %cst_12 [1] : vector<2x32x128xf32> to vector<2x128xf32>
    %30 = vector.shape_cast %29 : vector<2x128xf32> to vector<2x1x128xf32>
    %31 = vector.shape_cast %30 : vector<2x1x128xf32> to vector<2x128xf32>
    %c0_13 = arith.constant 0 : index
    %c0_14 = arith.constant 0 : index
    %32 = vector.load %arg4[%c0_13, %c0_14] : memref<2x128xf32, #tpu.memory_space<vmem>>, vector<2x128xf32>
    %cst_15 = arith.constant 1.000000e+00 : f32
    %33 = vector.broadcast %cst_15 : f32 to vector<2x128xf32>
    %34 = arith.subf %32, %33 : vector<2x128xf32>
    %cst_16 = arith.constant 1.000000e+09 : f32
    %35 = vector.broadcast %cst_16 : f32 to vector<2x128xf32>
    %36 = arith.mulf %34, %35 : vector<2x128xf32>
    %37 = arith.addf %31, %36 : vector<2x128xf32>
    %cst_17 = arith.constant dense<0xFF800000> : vector<2xf32>
    %38 = vector.multi_reduction <maximumf>, %37, %cst_17 [1] : vector<2x128xf32> to vector<2xf32>
    %39 = vector.shape_cast %38 : vector<2xf32> to vector<2x1xf32>
    %40 = arith.addf %31, %36 : vector<2x128xf32>
    %41 = vector.broadcast %39 : vector<2x1xf32> to vector<2x128xf32>
    %42 = arith.subf %40, %41 : vector<2x128xf32>
    %43 = math.exp %42 : vector<2x128xf32>
    %44 = arith.mulf %43, %32 : vector<2x128xf32>
    %cst_18 = arith.constant dense<0.000000e+00> : vector<2xf32>
    %45 = vector.multi_reduction <add>, %44, %cst_18 [1] : vector<2x128xf32> to vector<2xf32>
    %46 = vector.shape_cast %45 : vector<2xf32> to vector<2x1xf32>
    %47 = tpu.reciprocal %46 : vector<2x1xf32> -> vector<2x1xf32>
    %48 = vector.broadcast %47 : vector<2x1xf32> to vector<2x128xf32>
    %49 = arith.mulf %44, %48 : vector<2x128xf32>
    %50 = vector.shape_cast %49 : vector<2x128xf32> to vector<2x1x128xf32>
    %c0_19 = arith.constant 0 : index
    %c0_20 = arith.constant 0 : index
    %c0_21 = arith.constant 0 : index
    %51 = vector.load %arg2[%c0_19, %c0_20, %c0_21] : memref<2x32x128xf32, #tpu.memory_space<vmem>>, vector<2x32x128xf32>
    "tpu.trace_start"() <{level = 10 : i32, message = "bqt,bnt->bqn"}> : () -> ()
    %cst_22 = arith.constant dense<0.000000e+00> : vector<2x1x32xf32>
    %52 = tpu.matmul %50, %51, %cst_22 {dimension_numbers = #tpu.dot_dimension_numbers<[2], [2], [1], [1], [0, 0, 0, 1, 1, 1], [0], [0]>} : vector<2x1x128xf32>, vector<2x32x128xf32>, vector<2x1x32xf32> -> vector<2x1x32xf32>
    "tpu.trace_stop"() : () -> ()
    %53 = vector.shape_cast %52 : vector<2x1x32xf32> to vector<2x32xf32>
    %c0_23 = arith.constant 0 : index
    %c0_24 = arith.constant 0 : index
    %54 = vector.load %arg8[%c0_23, %c0_24] : memref<2x32xf32, #tpu.memory_space<vmem>>, vector<2x32xf32>
    tpu.vector_store %arg8[%c0_23, %c0_24], %53 {strides = array<i32>} : memref<2x32xf32, #tpu.memory_space<vmem>>, vector<2x32xf32>,
    %c0_25 = arith.constant 0 : index
    %c0_26 = arith.constant 0 : index
    %55 = vector.load %arg9[%c0_25, %c0_26] : memref<2x128xf32, #tpu.memory_space<vmem>>, vector<2x128xf32>
    tpu.vector_store %arg9[%c0_25, %c0_26], %49 {strides = array<i32>} : memref<2x128xf32, #tpu.memory_space<vmem>>, vector<2x128xf32>,
    %c0_27 = arith.constant 0 : index
    %c0_28 = arith.constant 0 : index
    %56 = vector.load %arg5[%c0_27, %c0_28] : memref<2x128xf32, #tpu.memory_space<vmem>>, vector<2x128xf32>
    %57 = arith.addf %56, %49 : vector<2x128xf32>
    %c0_29 = arith.constant 0 : index
    %c0_30 = arith.constant 0 : index
    %58 = vector.load %arg10[%c0_29, %c0_30] : memref<2x128xf32, #tpu.memory_space<vmem>>, vector<2x128xf32>
    tpu.vector_store %arg10[%c0_29, %c0_30], %57 {strides = array<i32>} : memref<2x128xf32, #tpu.memory_space<vmem>>, vector<2x128xf32>,
    return
  }
  func.func @transform_0(%arg0: i32) -> (i32, i32) {
    %c0_i32 = arith.constant 0 : i32
    %c0_i32_0 = arith.constant 0 : i32
    return %arg0, %c0_i32 : i32, i32
  }
  func.func @transform_1(%arg0: i32) -> (i32, i32, i32) {
    %c0_i32 = arith.constant 0 : i32
    %c0_i32_0 = arith.constant 0 : i32
    %c0_i32_1 = arith.constant 0 : i32
    return %arg0, %c0_i32, %c0_i32_0 : i32, i32, i32
  }
  func.func @transform_2(%arg0: i32) -> (i32, i32, i32) {
    %c0_i32 = arith.constant 0 : i32
    %c0_i32_0 = arith.constant 0 : i32
    %c0_i32_1 = arith.constant 0 : i32
    return %arg0, %c0_i32, %c0_i32_0 : i32, i32, i32
  }
  func.func @transform_3(%arg0: i32) -> (i32, i32) {
    %c0_i32 = arith.constant 0 : i32
    %c0_i32_0 = arith.constant 0 : i32
    return %arg0, %c0_i32 : i32, i32
  }
  func.func @transform_4(%arg0: i32) -> (i32, i32) {
    %c0_i32 = arith.constant 0 : i32
    %c0_i32_0 = arith.constant 0 : i32
    return %arg0, %c0_i32 : i32, i32
  }
  func.func @transform_5(%arg0: i32) -> (i32, i32) {
    %c0_i32 = arith.constant 0 : i32
    %c0_i32_0 = arith.constant 0 : i32
    %c0_i32_1 = arith.constant 0 : i32
    return %c0_i32, %c0_i32_0 : i32, i32
  }
  func.func @transform_6(%arg0: i32) -> (i32, i32) {
    %c0_i32 = arith.constant 0 : i32
    %c0_i32_0 = arith.constant 0 : i32
    %c0_i32_1 = arith.constant 0 : i32
    return %c0_i32, %c0_i32_0 : i32, i32
  }
  func.func @transform_7(%arg0: i32) -> (i32, i32) {
    %c0_i32 = arith.constant 0 : i32
    %c0_i32_0 = arith.constant 0 : i32
    return %arg0, %c0_i32 : i32, i32
  }
  func.func @transform_8(%arg0: i32) -> (i32, i32) {
    %c0_i32 = arith.constant 0 : i32
    %c0_i32_0 = arith.constant 0 : i32
    return %arg0, %c0_i32 : i32, i32
  }
  func.func @transform_9(%arg0: i32) -> (i32, i32) {
    %c0_i32 = arith.constant 0 : i32
    %c0_i32_0 = arith.constant 0 : i32
    return %arg0, %c0_i32 : i32, i32
  }
}

</mosaic_0001>

<llo_original>
// kernel: tpu_custom_call.1
$region0: #{tpu_custom_call.1}
  #allocation0 [shape = 'u32[]', space=smem, size = 0x4, offset = 0x4, fixed_abs, tag = 'smem constant byte address 0x4 - core index']
  #allocation1 [shape = 'u32[72,128]{1,0:T(1,128)}', space=vmem, size = 0x9000, scoped, tag = 'internal scratch']
  %s0 = inlined_call_operand.vmem [shape: f32[2,32], index: 0, kind: input, shape index: {}]
  %s1 = inlined_call_operand.hbm [shape: f32[2,32,128], index: 1, kind: input, shape index: {}]
  %s2 = inlined_call_operand.hbm [shape: f32[2,32,128], index: 2, kind: input, shape index: {}]
  %s3 = inlined_call_operand.vmem [shape: f32[2,128], index: 3, kind: input, shape index: {}]
  %s4 = inlined_call_operand.hbm [shape: f32[2,128], index: 4, kind: input, shape index: {}]
  %s5 = inlined_call_operand.vmem [shape: f32[32,32], index: 5, kind: input, shape index: {}]
  %s6 = inlined_call_operand.vmem [shape: f32[32,3], index: 6, kind: input, shape index: {}]
  %s7 = inlined_call_operand.hbm [shape: f32[2,32], index: 7, kind: output, shape index: {0}]
  %s8 = inlined_call_operand.hbm [shape: f32[2,128], index: 8, kind: output, shape index: {1}]
  %s9 = inlined_call_operand.hbm [shape: f32[2,128], index: 9, kind: output, shape index: {2}]
  %10 = xla_tuple %s7, %s8, %s9
  %s11 = sld [smem:[#allocation0]]
  $region66: #{tpu_custom_call.1} parent=0
    _
  %s13 = ssub.s32 1, %s11
  %s14 = scalar_select 0, %s13, %s11
  $region1: #{tpu_custom_call.1} parent=0
    #allocation2 [shape = 'u8[32768]{0}', space=vmem, size = 0x8000, scoped, tag = 'input window, operand 1, single buffered']
    #allocation3 [shape = 's32[1]{0}', space=sflag, size = 0x4, scoped, tag = 'scoped memory for tpu_custom_call.1']
    #allocation4 [shape = 's32[1]{0}', space=sflag, size = 0x4, scoped, tag = 'scoped memory for tpu_custom_call.1']
    #allocation5 [shape = 'u8[32768]{0}', space=vmem, size = 0x8000, scoped, tag = 'input window, operand 2, single buffered']
    #allocation6 [shape = 's32[1]{0}', space=sflag, size = 0x4, scoped, tag = 'scoped memory for tpu_custom_call.1']
    #allocation7 [shape = 'u8[1024]{0}', space=vmem, size = 0x400, scoped, tag = 'input window, operand 4, single buffered']
    #allocation8 [shape = 'u8[1024]{0}', space=vmem, size = 0x400, scoped, tag = 'output window, operand 0, single buffered']
    #allocation9 [shape = 'u8[1024]{0}', space=vmem, size = 0x400, scoped, tag = 'output window, operand 1, single buffered']
    #allocation10 [shape = 's32[1]{0}', space=sflag, size = 0x4, scoped, tag = 'scoped memory for tpu_custom_call.1']
    #allocation11 [shape = 'u8[1024]{0}', space=vmem, size = 0x400, scoped, tag = 'output window, operand 2, single buffered']
    %15 = vsyncpa [#allocation3], 0
    %16 = vsyncpa [#allocation6], 0
    %17 = vsyncpa [#allocation4], 0
    %18 = vsyncpa [#allocation10], 0
    // Predicated region
    $region2: #{tpu_custom_call.1} parent=1 // pred_check
      _
    $region3: #{tpu_custom_call.1} parent=1 // pred_check_branch
      %20 = sbr.rel (0) target = $region5
    $region4: #{tpu_custom_call.1} parent=1 // pred_region
      _
    $region5: #{tpu_custom_call.1} parent=1 // pred_fallthru
      _
    // Predicated region
    $region6: #{tpu_custom_call.1} parent=1 // pred_check
      _
    $region7: #{tpu_custom_call.1} parent=1 // pred_check_branch
      %22 = sbr.rel (0) target = $region9
    $region8: #{tpu_custom_call.1} parent=1 // pred_region
      %24 = vsyncadd [#allocation3], 0
      %s25 = sshll.u32 %s1, 4
      %s26 = int_to_ptr.hbm [resolvable:$true] %s25
      %s27 = sshll.u32 [#allocation2], 4
      %s28 = int_to_ptr.vmem [resolvable:$true] %s27
      %33 = dma.hbm_to_vmem [thread:$0]  %s26, 1024, %s28, [#allocation3], 128, 128, 8
    $region9: #{tpu_custom_call.1} parent=1 // pred_fallthru
      _
    // Predicated region
    $region10: #{tpu_custom_call.1} parent=1 // pred_check
      _
    $region11: #{tpu_custom_call.1} parent=1 // pred_check_branch
      %35 = sbr.rel (0) target = $region13
    $region12: #{tpu_custom_call.1} parent=1 // pred_region
      %37 = vsyncadd [#allocation6], 0
      %s38 = sshll.u32 %s2, 4
      %s39 = int_to_ptr.hbm [resolvable:$true] %s38
      %s40 = sshll.u32 [#allocation5], 4
      %s41 = int_to_ptr.vmem [resolvable:$true] %s40
      %46 = dma.hbm_to_vmem [thread:$0]  %s39, 1024, %s41, [#allocation6], 128, 128, 8
    $region13: #{tpu_custom_call.1} parent=1 // pred_fallthru
      _
    // Predicated region
    $region14: #{tpu_custom_call.1} parent=1 // pred_check
      _
    $region15: #{tpu_custom_call.1} parent=1 // pred_check_branch
      %48 = sbr.rel (0) target = $region17
    $region16: #{tpu_custom_call.1} parent=1 // pred_region
      _
    $region17: #{tpu_custom_call.1} parent=1 // pred_fallthru
      _
    // Predicated region
    $region18: #{tpu_custom_call.1} parent=1 // pred_check
      _
    $region19: #{tpu_custom_call.1} parent=1 // pred_check_branch
      %50 = sbr.rel (0) target = $region21
    $region20: #{tpu_custom_call.1} parent=1 // pred_region
      %52 = vsyncadd [#allocation6], 0
      %s54 = sshll.u32 %s4, 4
      %s55 = int_to_ptr.hbm [resolvable:$true] %s54
      %s56 = sshll.u32 [#allocation7], 4
      %s57 = int_to_ptr.vmem [resolvable:$true] %s56
      %59 = dma.hbm_to_vmem [thread:$0]  %s55, 32, %s57, [#allocation6]
    $region21: #{tpu_custom_call.1} parent=1 // pred_fallthru
      _
    // Predicated region
    $region22: #{tpu_custom_call.1} parent=1 // pred_check
      _
    $region23: #{tpu_custom_call.1} parent=1 // pred_check_branch
      %61 = sbr.rel (0) target = $region25
    $region24: #{tpu_custom_call.1} parent=1 // pred_region
      _
    $region25: #{tpu_custom_call.1} parent=1 // pred_fallthru
      _
    // Predicated region
    $region26: #{tpu_custom_call.1} parent=1 // pred_check
      _
    $region27: #{tpu_custom_call.1} parent=1 // pred_check_branch
      %63 = sbr.rel (0) target = $region29
    $region28: #{tpu_custom_call.1} parent=1 // pred_region
      _
    $region29: #{tpu_custom_call.1} parent=1 // pred_fallthru
      _
    // Predicated region
    $region30: #{tpu_custom_call.1} parent=1 // pred_check
      _
    $region31: #{tpu_custom_call.1} parent=1 // pred_check_branch
      %65 = sbr.rel (0) target = $region33
    $region32: #{tpu_custom_call.1} parent=1 // pred_region
      %67 = dma.done [#allocation3], 1024
    $region33: #{tpu_custom_call.1} parent=1 // pred_fallthru
      _
    // Predicated region
    $region34: #{tpu_custom_call.1} parent=1 // pred_check
      _
    $region35: #{tpu_custom_call.1} parent=1 // pred_check_branch
      %69 = sbr.rel (0) target = $region37
    $region36: #{tpu_custom_call.1} parent=1 // pred_region
      %71 = dma.done [#allocation6], 1024
    $region37: #{tpu_custom_call.1} parent=1 // pred_fallthru
      _
    // Predicated region
    $region38: #{tpu_custom_call.1} parent=1 // pred_check
      _
    $region39: #{tpu_custom_call.1} parent=1 // pred_check_branch
      %73 = sbr.rel (0) target = $region41
    $region40: #{tpu_custom_call.1} parent=1 // pred_region
      %75 = dma.done [#allocation6], 32
    $region41: #{tpu_custom_call.1} parent=1 // pred_fallthru
      _
    %v76 = vld [vmem:[%s6] sm:$0xff]
    %v77 = vld [vmem:[%s6 + $0x8] sm:$0xff]
    %v78 = vld [vmem:[%s6 + $0x10] sm:$0xff]
    %v79 = vld [vmem:[%s6 + $0x18] sm:$0xff]
    %v80 = vld [vmem:[%s5] sm:$0xff]
    %v81 = vld [vmem:[%s5 + $0x8] sm:$0xff]
    %v82 = vld [vmem:[%s5 + $0x10] sm:$0xff]
    %v83 = vld [vmem:[%s5 + $0x18] sm:$0xff]
    %v84 = vld [vmem:[%s0] sm:$0x3]
    %v86 = vrot.slane %v84, 1
    %v87 = vperm.slane %v84, 0
    %v88 = vperm.slane %v86, 0
    %v91 = vmul.f32 %v80, %v87
    %v92 = vmul.f32 %v81, %v87
    %v93 = vmul.f32 %v82, %v87
    %v94 = vmul.f32 %v83, %v87
    %v95 = vmul.f32 %v80, %v88
    %v96 = vmul.f32 %v81, %v88
    %v97 = vmul.f32 %v82, %v88
    %v98 = vmul.f32 %v83, %v88
    %vm99 = vcmask 261120
    %v100 = vsel %vm99, %v91, 0.0
    %101 = vadd.xlane.f32.xlu0 %v100
    %v102 = vpop.xlane.xlu0 %101
    %v103 = vsel %vm99, %v92, 0.0
    %104 = vadd.xlane.f32.xlu0 %v103
    %v105 = vpop.xlane.xlu0 %104
    %v106 = vsel %vm99, %v93, 0.0
    %107 = vadd.xlane.f32.xlu0 %v106
    %v108 = vpop.xlane.xlu0 %107
    %v109 = vsel %vm99, %v94, 0.0
    %110 = vadd.xlane.f32.xlu0 %v109
    %v111 = vpop.xlane.xlu0 %110
    %v112 = vsel %vm99, %v95, 0.0
    %113 = vadd.xlane.f32.xlu0 %v112
    %v114 = vpop.xlane.xlu0 %113
    %v115 = vsel %vm99, %v96, 0.0
    %116 = vadd.xlane.f32.xlu0 %v115
    %v117 = vpop.xlane.xlu0 %116
    %v118 = vsel %vm99, %v97, 0.0
    %119 = vadd.xlane.f32.xlu0 %v118
    %v120 = vpop.xlane.xlu0 %119
    %v121 = vsel %vm99, %v98, 0.0
    %122 = vadd.xlane.f32.xlu0 %v121
    %v123 = vpop.xlane.xlu0 %122
    %v124 = vadd.f32 %v102, %v76
    %v125 = vadd.f32 %v105, %v77
    %v126 = vadd.f32 %v108, %v78
    %v127 = vadd.f32 %v111, %v79
    %v128 = vadd.f32 %v114, %v76
    %v129 = vadd.f32 %v117, %v77
    %v130 = vadd.f32 %v120, %v78
    %v131 = vadd.f32 %v123, %v79
    %v132 = vld [vmem:[#allocation5] sm:$0xff]
    %v133 = vld [vmem:[#allocation5 + $0x8] sm:$0xff]
    %v134 = vld [vmem:[#allocation5 + $0x10] sm:$0xff]
    %v135 = vld [vmem:[#allocation5 + $0x18] sm:$0xff]
    %v136 = vld [vmem:[#allocation5 + $0x20] sm:$0xff]
    %v137 = vld [vmem:[#allocation5 + $0x28] sm:$0xff]
    %v138 = vld [vmem:[#allocation5 + $0x30] sm:$0xff]
    %v139 = vld [vmem:[#allocation5 + $0x38] sm:$0xff]
    %141 = vset.pattern.permute.xlu0 0
    %142 = vperm.xlu0 %141, %v124
    %v143 = vpop.permute.xlu0 %142
    %146 = vset.pattern.permute.xlu0 0
    %147 = vperm.xlu0 %146, %v125
    %v148 = vpop.permute.xlu0 %147
    %151 = vset.pattern.permute.xlu0 0
    %152 = vperm.xlu0 %151, %v126
    %v153 = vpop.permute.xlu0 %152
    %156 = vset.pattern.permute.xlu0 0
    %157 = vperm.xlu0 %156, %v127
    %v158 = vpop.permute.xlu0 %157
    %161 = vset.pattern.permute.xlu0 0
    %162 = vperm.xlu0 %161, %v128
    %v163 = vpop.permute.xlu0 %162
    %166 = vset.pattern.permute.xlu0 0
    %167 = vperm.xlu0 %166, %v129
    %v168 = vpop.permute.xlu0 %167
    %171 = vset.pattern.permute.xlu0 0
    %172 = vperm.xlu0 %171, %v130
    %v173 = vpop.permute.xlu0 %172
    %176 = vset.pattern.permute.xlu0 0
    %177 = vperm.xlu0 %176, %v131
    %v178 = vpop.permute.xlu0 %177
    %v180 = vadd.f32 %v132, %v143
    %v181 = vadd.f32 %v133, %v148
    %v182 = vadd.f32 %v134, %v153
    %v183 = vadd.f32 %v135, %v158
    %v184 = vadd.f32 %v136, %v163
    %v185 = vadd.f32 %v137, %v168
    %v186 = vadd.f32 %v138, %v173
    %v187 = vadd.f32 %v139, %v178
    %v188 = vld [vmem:[#allocation7] sm:$0x3]
    %v190 = vrot.slane %v188, 1
    %v191 = vperm.slane %v188, 0
    %v192 = vperm.slane %v190, 0
    %196 = vset.pattern.permute.xlu0 2
    %197 = vperm.xlu0 %196, %v76
    %v198 = vpop.permute.xlu0 %197
    %201 = vset.pattern.permute.xlu0 2
    %202 = vperm.xlu0 %201, %v77
    %v203 = vpop.permute.xlu0 %202
    %206 = vset.pattern.permute.xlu0 2
    %207 = vperm.xlu0 %206, %v78
    %v208 = vpop.permute.xlu0 %207
    %211 = vset.pattern.permute.xlu0 2
    %212 = vperm.xlu0 %211, %v79
    %v213 = vpop.permute.xlu0 %212
    %v215 = vmul.f32 %v191, %v198
    %v216 = vmul.f32 %v191, %v203
    %v217 = vmul.f32 %v191, %v208
    %v218 = vmul.f32 %v191, %v213
    %v219 = vmul.f32 %v192, %v198
    %v220 = vmul.f32 %v192, %v203
    %v221 = vmul.f32 %v192, %v208
    %v222 = vmul.f32 %v192, %v213
    %v223 = vadd.f32 %v180, %v215
    %v224 = vadd.f32 %v181, %v216
    %v225 = vadd.f32 %v182, %v217
    %v226 = vadd.f32 %v183, %v218
    %v227 = vadd.f32 %v184, %v219
    %v228 = vadd.f32 %v185, %v220
    %v229 = vadd.f32 %v186, %v221
    %v230 = vadd.f32 %v187, %v222
    %v231 = vtanh.pop %v223
    %v232 = vtanh.pop %v224
    %v233 = vtanh.pop %v225
    %v234 = vtanh.pop %v226
    %v235 = vtanh.pop %v227
    %v236 = vtanh.pop %v228
    %v237 = vtanh.pop %v229
    %v238 = vtanh.pop %v230
    %239 = vset.pattern.permute.xlu0 1
    %240 = vperm.xlu0 %239, %v76
    %v241 = vpop.permute.xlu0 %240
    %243 = vset.pattern.permute.xlu0 1
    %244 = vperm.xlu0 %243, %v77
    %v245 = vpop.permute.xlu0 %244
    %247 = vset.pattern.permute.xlu0 1
    %248 = vperm.xlu0 %247, %v78
    %v249 = vpop.permute.xlu0 %248
    %251 = vset.pattern.permute.xlu0 1
    %252 = vperm.xlu0 %251, %v79
    %v253 = vpop.permute.xlu0 %252
    %v255 = vmul.f32 %v231, %v241
    %v256 = vmul.f32 %v232, %v245
    %v257 = vmul.f32 %v233, %v249
    %v258 = vmul.f32 %v234, %v253
    %v259 = vmul.f32 %v235, %v241
    %v260 = vmul.f32 %v236, %v245
    %v261 = vmul.f32 %v237, %v249
    %v262 = vmul.f32 %v238, %v253
    %v263 = vadd.f32 %v255, %v256
    %v264 = vadd.f32 %v263, %v257
    %v265 = vadd.f32 %v264, %v258
    %v266 = vrot.slane %v265, 4
    %v267 = vadd.f32 %v265, %v266
    %v268 = vrot.slane %v267, 2
    %v269 = vadd.f32 %v267, %v268
    %v270 = vrot.slane %v269, 1
    %v271 = vadd.f32 %v269, %v270
    %v272 = vadd.f32 %v259, %v260
    %v273 = vadd.f32 %v272, %v261
    %v274 = vadd.f32 %v273, %v262
    %v275 = vrot.slane %v274, 4
    %v276 = vadd.f32 %v274, %v275
    %v277 = vrot.slane %v276, 2
    %v278 = vadd.f32 %v276, %v277
    %v279 = vrot.slane %v278, 1
    %v280 = vadd.f32 %v278, %v279
    %v281 = vld [vmem:[%s3] sm:$0x3]
    %v282 = vsub.f32 %v281, 1.0
    %v283 = vmul.f32 %v282, 1e+09
    %v285 = vrot.slane %v283, 1
    %v288 = vadd.f32 %v271, %v283
    %v289 = vadd.f32 %v280, %v285
    %v292 = vrot.slane %v289, 7
    %vm293 = vcmask 1041409
    %v294 = vsel %vm293, %v292, %v288
    %vm296 = vcmask 1041408
    %v297 = vsel %vm296, %v294, -inf
    %298 = vmax.xlane.f32.xlu0 %v297
    %v299 = vpop.xlane.xlu0 %298
    %v301 = vrot.slane %v299, 1
    %v304 = vsub.f32 %v288, %v299
    %v305 = vsub.f32 %v289, %v301
    %v306 = vmul.f32 %v304, 1.442695
    %v307 = vpow.pop %v306
    %v308 = vmul.f32 %v305, 1.442695
    %v309 = vpow.pop %v308
    %v311 = vrot.slane %v281, 1
    %v314 = vmul.f32 %v307, %v281
    %v315 = vmul.f32 %v309, %v311
    %v318 = vrot.slane %v315, 7
    %v319 = vsel %vm293, %v318, %v314
    %v321 = vsel %vm296, %v319, 0.0
    %322 = vadd.xlane.f32.xlu0 %v321
    %v323 = vpop.xlane.xlu0 %322
    %v324 = vrcp.pop %v323
    %v325 = vmul.f32 %v323, %v324
    %v326 = vsub.f32 1.0, %v325
    %v327 = vmul.f32 %v324, %v326
    %v328 = vadd.f32 %v324, %v327
    %vm329 = vweird.f32 %v323
    %vm330 = vweird.f32 %v324
    %vm331 = vmor %vm329, %vm330
    %v332 = vsel %vm331, %v324, %v328
    %v333 = vand.u32 2147483647, %v323
    %vm334 = vcmp.eq.f32.partialorder %v333, 8.507059e+37
    %v335 = vand.u32 %v323, 2147483648
    %v336 = vor.u32 1.1754944e-38, %v335
    %v337 = vsel %vm334, %v336, %v332
    %v339 = vrot.slane %v337, 1
    %v342 = vmul.f32 %v314, %v337
    %v343 = vmul.f32 %v315, %v339
    %v344 = vld [vmem:[#allocation2] sm:$0xff]
    %v345 = vld [vmem:[#allocation2 + $0x8] sm:$0xff]
    %v346 = vld [vmem:[#allocation2 + $0x10] sm:$0xff]
    %v347 = vld [vmem:[#allocation2 + $0x18] sm:$0xff]
    %v348 = vld [vmem:[#allocation2 + $0x20] sm:$0xff]
    %v349 = vld [vmem:[#allocation2 + $0x28] sm:$0xff]
    %v350 = vld [vmem:[#allocation2 + $0x30] sm:$0xff]
    %v351 = vld [vmem:[#allocation2 + $0x38] sm:$0xff]
    %352 = vmatpush.xpose.msra.mxu0 0.0
    %353 = vmatpush.xpose.msra.mxu0 0.0
    %354 = vmatpush.xpose.msra.mxu0 0.0
    %355 = vmatpush.xpose.msra.mxu0 0.0
    %356 = vmatpush.xpose.msra.mxu0 0.0
    %357 = vmatpush.xpose.msra.mxu0 0.0
    %358 = vmatpush.xpose.msra.mxu0 0.0
    %359 = vmatpush.xpose.msra.mxu0 0.0
    %360 = vmatpush.xpose.msra.mxu0 0.0
    %361 = vmatpush.xpose.msra.mxu0 0.0
    %362 = vmatpush.xpose.msra.mxu0 0.0
    %363 = vmatpush.xpose.msra.mxu0 0.0
    %364 = vmatpush.xpose.msra.mxu0 %v347
    %365 = vmatpush.xpose.msra.mxu0 %v346
    %366 = vmatpush.xpose.msra.mxu0 %v345
    %367 = vmatpush.xpose.msra.mxu0 %v344
    %368 = vmatmul.f32.gmra.mxu0 %v342
    %v369 = vpop.f32.mrf.mxu0
    %v370 = vadd.f32 0.0, %v369
    %371 = vdwg.mxu0
    %372 = vmatpush.xpose.msra.mxu0 0.0
    %373 = vmatpush.xpose.msra.mxu0 0.0
    %374 = vmatpush.xpose.msra.mxu0 0.0
    %375 = vmatpush.xpose.msra.mxu0 0.0
    %376 = vmatpush.xpose.msra.mxu0 0.0
    %377 = vmatpush.xpose.msra.mxu0 0.0
    %378 = vmatpush.xpose.msra.mxu0 0.0
    %379 = vmatpush.xpose.msra.mxu0 0.0
    %380 = vmatpush.xpose.msra.mxu0 0.0
    %381 = vmatpush.xpose.msra.mxu0 0.0
    %382 = vmatpush.xpose.msra.mxu0 0.0
    %383 = vmatpush.xpose.msra.mxu0 0.0
    %384 = vmatpush.xpose.msra.mxu0 %v351
    %385 = vmatpush.xpose.msra.mxu0 %v350
    %386 = vmatpush.xpose.msra.mxu0 %v349
    %387 = vmatpush.xpose.msra.mxu0 %v348
    %388 = vmatmul.f32.gmra.mxu0 %v343
    %v389 = vpop.f32.mrf.mxu0
    %v390 = vadd.f32 0.0, %v389
    %391 = vdwg.mxu0
    %v394 = vrot.slane %v390, 7
    %v395 = vsel %vm293, %v394, %v370
    %vm397 = vcmask 254976
    %398 = vst.msk [vmem:[#allocation8] sm:$0x3] %vm397, %v395
    %v401 = vrot.slane %v343, 7
    %v402 = vsel %vm293, %v401, %v342
    %404 = vst [vmem:[#allocation9] sm:$0x3] %v402
    %v405 = vld [vmem:[#allocation7] sm:$0x3]
    %v406 = vadd.f32 %v405, %v402
    %407 = vst [vmem:[#allocation11] sm:$0x3] %v406
    // Predicated region
    $region42: #{tpu_custom_call.1} parent=1 // pred_check
      _
    $region43: #{tpu_custom_call.1} parent=1 // pred_check_branch
      %409 = sbr.rel (0) target = $region45
    $region44: #{tpu_custom_call.1} parent=1 // pred_region
      %411 = vsyncadd [#allocation4], 0
      %s413 = sshll.u32 [#allocation8], 4
      %s414 = int_to_ptr.vmem [resolvable:$true] %s413
      %s415 = sshll.u32 %s7, 4
      %s416 = int_to_ptr.hbm [resolvable:$true] %s415
      %418 = dma.vmem_to_hbm [thread:$0]  %s414, 32, %s416, [#allocation4]
    $region45: #{tpu_custom_call.1} parent=1 // pred_fallthru
      _
    // Predicated region
    $region46: #{tpu_custom_call.1} parent=1 // pred_check
      _
    $region47: #{tpu_custom_call.1} parent=1 // pred_check_branch
      %420 = sbr.rel (0) target = $region49
    $region48: #{tpu_custom_call.1} parent=1 // pred_region
      %422 = vsyncadd [#allocation10], 0
      %s424 = sshll.u32 [#allocation9], 4
      %s425 = int_to_ptr.vmem [resolvable:$true] %s424
      %s426 = sshll.u32 %s8, 4
      %s427 = int_to_ptr.hbm [resolvable:$true] %s426
      %429 = dma.vmem_to_hbm [thread:$0]  %s425, 32, %s427, [#allocation10]
    $region49: #{tpu_custom_call.1} parent=1 // pred_fallthru
      _
    // Predicated region
    $region50: #{tpu_custom_call.1} parent=1 // pred_check
      _
    $region51: #{tpu_custom_call.1} parent=1 // pred_check_branch
      %431 = sbr.rel (0) target = $region53
    $region52: #{tpu_custom_call.1} parent=1 // pred_region
      %433 = vsyncadd [#allocation10], 0
      %s435 = sshll.u32 [#allocation11], 4
      %s436 = int_to_ptr.vmem [resolvable:$true] %s435
      %s437 = sshll.u32 %s9, 4
      %s438 = int_to_ptr.hbm [resolvable:$true] %s437
      %440 = dma.vmem_to_hbm [thread:$0]  %s436, 32, %s438, [#allocation10]
    $region53: #{tpu_custom_call.1} parent=1 // pred_fallthru
      _
    // Predicated region
    $region54: #{tpu_custom_call.1} parent=1 // pred_check
      _
    $region55: #{tpu_custom_call.1} parent=1 // pred_check_branch
      %442 = sbr.rel (0) target = $region57
    $region56: #{tpu_custom_call.1} parent=1 // pred_region
      %444 = dma.done [#allocation4], 32
    $region57: #{tpu_custom_call.1} parent=1 // pred_fallthru
      _
    // Predicated region
    $region58: #{tpu_custom_call.1} parent=1 // pred_check
      _
    $region59: #{tpu_custom_call.1} parent=1 // pred_check_branch
      %446 = sbr.rel (0) target = $region61
    $region60: #{tpu_custom_call.1} parent=1 // pred_region
      %448 = dma.done [#allocation10], 32
    $region61: #{tpu_custom_call.1} parent=1 // pred_fallthru
      _
    // Predicated region
    $region62: #{tpu_custom_call.1} parent=1 // pred_check
      _
    $region63: #{tpu_custom_call.1} parent=1 // pred_check_branch
      %450 = sbr.rel (0) target = $region65
    $region64: #{tpu_custom_call.1} parent=1 // pred_region
      %452 = dma.done [#allocation10], 32
    $region65: #{tpu_custom_call.1} parent=1 // pred_fallthru
      _
    %453 = vsyncpa [#allocation3], 1
    %454 = vsyncpa [#allocation6], 1
    %455 = vsyncpa [#allocation4], 1
    %456 = vsyncpa [#allocation10], 1

</llo_original>
